<compile_context>
chip_gen: v5e
topology: v5e:2x2
jax: 0.10.0
libtpu: 0.0.40
codegen_flags: <defaults>
</compile_context>

<pallas_src>
import functools

import jax
import jax.numpy as jnp
from jax import lax
from jax.experimental import pallas as pl
from jax.experimental.pallas import tpu as pltpu


IN_FEATURES = 3
OUT_FEATURES = 3
HIDDEN = 500

IN_PAD = 128      # w1 rows padded 3 -> 128 (= OUT_PAD so Euler state feeds back)
HIDDEN_PAD = 512  # 500 -> 512 (4 x 128 lanes)
OUT_PAD = 128     # 3 -> 128 (lane-dense output)


def _mlp(y, w1, b1, w2, b2, w3, b3):
    """MLP on padded operands.

    y : (B, IN_PAD) f32   (columns 3..127 are zero)
    w1: (IN_PAD, HIDDEN_PAD) f32,  w2: (HIDDEN_PAD, HIDDEN_PAD) bf16,
    w3: (HIDDEN_PAD, OUT_PAD) bf16,  b1/b2/b3: f32 (broadcastable).
    All padding is zeros, so the first OUT_FEATURES output columns equal the
    unpadded network (up to bf16 rounding on the w2/w3 matmuls).
    """
    # Layer 1: K=128 padded f32 matmul (MXU has slack here; exact since pad=0).
    h1 = jnp.tanh(jnp.dot(y, w1, preferred_element_type=jnp.float32) + b1)
    # Layer 2/3: bf16 operands, f32 accumulation.
    h2 = jnp.dot(h1.astype(jnp.bfloat16), w2,
                 preferred_element_type=jnp.float32) + b2
    h2 = jnp.maximum(h2, 0.0)
    out = jnp.dot(h2.astype(jnp.bfloat16), w3,
                  preferred_element_type=jnp.float32) + b3
    return out                                                    # (B, OUT_PAD) f32


# ----------------------------------------------------------------------------
# Single RHS evaluation: forward(t, y)
# ----------------------------------------------------------------------------
def ode_func_kernel(y_ref, w1_ref, b1_ref, w2_ref, b2_ref, w3_ref, b3_ref, o_ref):
    out = _mlp(y_ref[...], w1_ref[...], b1_ref[...], w2_ref[...], b2_ref[...],
               w3_ref[...], b3_ref[...])
    o_ref[...] = out.astype(o_ref.dtype)


def ode_func_forward(t, y, params):
    """Pallas equivalent of ODEFunc.forward(t, y). `t` is ignored (as in PyTorch)."""
    del t
    w1, b1, w2, b2, w3, b3 = params
    batch = y.shape[0]
    y_pad = jnp.zeros((batch, IN_PAD), jnp.float32).at[:, :IN_FEATURES].set(
        y.astype(jnp.float32))

    vmem = lambda: pl.BlockSpec(memory_space=pltpu.VMEM)
    out_pad = pl.pallas_call(
        ode_func_kernel,
        out_shape=jax.ShapeDtypeStruct((batch, OUT_PAD), jnp.float32),
        in_specs=[vmem() for _ in range(7)],
        out_specs=vmem(),
    )(y_pad, w1, b1, w2, b2, w3, b3)
    return out_pad[:, :OUT_FEATURES]


# ----------------------------------------------------------------------------
# Fused rollout: n_steps explicit-Euler steps, S steps unrolled per grid block.
# ----------------------------------------------------------------------------
def _fused_euler_kernel(y0_ref, w1_ref, b1_ref, w2_ref, b2_ref, w3_ref, b3_ref,
                        traj_ref, y_sc, *, dt, unroll):
    t_blk = pl.program_id(1)

    @pl.when(t_blk == 0)
    def _():
        y_sc[...] = y0_ref[...]          # (re)load initial state for this chunk

    chunk_b = y_sc.shape[0]

    # Loaded / broadcast ONCE per grid block, hoisted out of the step loop.
    w1 = w1_ref[...]                                         # f32 (128, 512)
    w2 = w2_ref[...]                                         # bf16 (512, 512)
    w3 = w3_ref[...]                                         # bf16 (512, 128)
    b1 = jnp.broadcast_to(b1_ref[...], (chunk_b, HIDDEN_PAD))
    b2 = jnp.broadcast_to(b2_ref[...], (chunk_b, HIDDEN_PAD))
    b3 = jnp.broadcast_to(b3_ref[...], (chunk_b, OUT_PAD))

    def step(i, y):
        f = _mlp(y, w1, b1, w2, b2, w3, b3)                  # (chunk_b, 128) f32
        y_new = y + dt * f
        traj_ref[i, :, :] = y_new                            # stream sub-step out
        return y_new

    # y carried in vregs across the unrolled sub-steps; spill only at the end.
    y_final = lax.fori_loop(0, unroll, step, y_sc[...], unroll=True)
    y_sc[...] = y_final


def ode_fused_euler(y0, params, *, n_steps, dt, unroll=8, batch_chunks=None,
                    unpad=True):
    """Integrate y' = MLP(y) with forward Euler for n_steps in one pallas_call.

    Returns the trajectory (n_steps, batch, 3) (or the padded (n_steps, batch,
    128) layout if unpad=False, recommended for long rollouts).
    For MXU efficiency, batch many trajectories together (batch >= 128/256).
    """
    w1, b1, w2, b2, w3, b3 = params
    batch = y0.shape[0]

    # Pick an unroll factor that divides n_steps.
    unroll = max(1, min(int(unroll), n_steps))
    while n_steps % unroll:
        unroll -= 1
    n_blocks = n_steps // unroll

    # Optional batch split for v7x's two TensorCores (each chunk must keep the
    # (8,128)-divisible block shape).
    if batch_chunks is None:
        batch_chunks = 2 if (batch % 16 == 0) else 1
    assert batch % batch_chunks == 0
    chunk_b = batch // batch_chunks

    y0_pad = jnp.zeros((batch, OUT_PAD), jnp.float32).at[:, :IN_FEATURES].set(
        y0.astype(jnp.float32))

    const = lambda shape: pl.BlockSpec(shape, lambda c, s: (0, 0))  # resident
    grid_spec = pltpu.PrefetchScalarGridSpec(
        num_scalar_prefetch=0,
        grid=(batch_chunks, n_blocks),
        in_specs=[
            pl.BlockSpec((chunk_b, OUT_PAD), lambda c, s: (c, 0)),  # y0
            const((IN_PAD, HIDDEN_PAD)),        # w1 (f32)
            const((1, HIDDEN_PAD)),             # b1
            const((HIDDEN_PAD, HIDDEN_PAD)),    # w2 (bf16)
            const((1, HIDDEN_PAD)),             # b2
            const((HIDDEN_PAD, OUT_PAD)),       # w3 (bf16)
            const((1, OUT_PAD)),                # b3
        ],
        out_specs=pl.BlockSpec((unroll, chunk_b, OUT_PAD),
                               lambda c, s: (s, c, 0)),
        scratch_shapes=[pltpu.VMEM((chunk_b, OUT_PAD), jnp.float32)],
    )

    # VMEM budget (double-buffered): weights ~1 MB + y0 + output block
    # 2*unroll*chunk_b*512 B -- far under the scoped default on all gens at
    # these sizes; re-check and set vmem_limit_bytes if unroll*batch is grown.
    traj_pad = pl.pallas_call(
        functools.partial(_fused_euler_kernel, dt=float(dt), unroll=unroll),
        out_shape=jax.ShapeDtypeStruct((n_steps, batch, OUT_PAD), jnp.float32),
        grid_spec=grid_spec,
        compiler_params=pltpu.CompilerParams(
            dimension_semantics=("parallel", "arbitrary")),  # time is sequential
    )(y0_pad, w1, b1, w2, b2, w3, b3)

    if unpad:
        return traj_pad[:, :, :OUT_FEATURES]
    return traj_pad


# ----------------------------------------------------------------------------
# Parameter init (matches nn.init.normal_(std=0.1) weights, zero biases),
# stored pre-padded; w2/w3 stored in bf16 for the MXU fast path.
# ----------------------------------------------------------------------------
def init_params(key):
    k1, k2, k3 = jax.random.split(key, 3)

    def make(k, d_in, d_out, pad_in, pad_out, dtype):
        w = 0.1 * jax.random.normal(k, (d_in, d_out), dtype=jnp.float32)
        w_pad = jnp.zeros((pad_in, pad_out), jnp.float32).at[:d_in, :d_out].set(w)
        b_pad = jnp.zeros((1, pad_out), jnp.float32)
        return w_pad.astype(dtype), b_pad

    w1, b1 = make(k1, IN_FEATURES, HIDDEN, IN_PAD, HIDDEN_PAD, jnp.float32)
    w2, b2 = make(k2, HIDDEN, HIDDEN, HIDDEN_PAD, HIDDEN_PAD, jnp.bfloat16)
    w3, b3 = make(k3, HIDDEN, OUT_FEATURES, HIDDEN_PAD, OUT_PAD, jnp.bfloat16)
    return (w1, b1, w2, b2, w3, b3)


if __name__ == "__main__":
    key = jax.random.PRNGKey(0)
    pkey, ykey = jax.random.split(key)
    params = init_params(pkey)

    batch = 8
    y = jax.random.normal(ykey, (batch, IN_FEATURES), dtype=jnp.float32)
    t = jnp.float32(0.0)  # unused, as in the PyTorch forward

    # --- single forward evaluation -----------------------------------------
    out = ode_func_forward(t, y, params)
    out = jax.block_until_ready(out)

    # Pure-JAX reference mirroring the kernel numerics (bf16 w2/w3 matmuls
    # with f32 accumulation; f32 layer 1, biases, activations).
    w1, b1, w2, b2, w3, b3 = params
    w1l, b1l = w1[:IN_FEATURES, :HIDDEN], b1[:, :HIDDEN]
    w2l, b2l = w2[:HIDDEN, :HIDDEN], b2[:, :HIDDEN]
    w3l, b3l = w3[:HIDDEN, :OUT_FEATURES], b3[:, :OUT_FEATURES]

    def rhs_ref(yy):
        h1 = jnp.tanh(jnp.dot(yy, w1l, precision=lax.Precision.HIGHEST) + b1l)
        h2 = jnp.dot(h1.astype(jnp.bfloat16), w2l,
                     preferred_element_type=jnp.float32) + b2l
        h2 = jnp.maximum(h2, 0.0)
        return jnp.dot(h2.astype(jnp.bfloat16), w3l,
                       preferred_element_type=jnp.float32) + b3l

    ref = rhs_ref(y)
    assert out.shape == (batch, OUT_FEATURES)
    assert jnp.allclose(out, ref, atol=2e-2, rtol=2e-2), (
        f"forward mismatch: max err {jnp.max(jnp.abs(out - ref))}")

    # --- fused multi-step rollout (weights resident, S steps per grid block) -
    n_steps, dt = 16, 0.05
    traj = ode_fused_euler(y, params, n_steps=n_steps, dt=dt, unroll=8)
    traj = jax.block_until_ready(traj)

    yy = y
    steps = []
    for _ in range(n_steps):
        yy = yy + dt * rhs_ref(yy)
        steps.append(yy)
    traj_ref = jnp.stack(steps)

    assert traj.shape == (n_steps, batch, OUT_FEATURES)
    assert jnp.allclose(traj, traj_ref, atol=5e-2, rtol=5e-2), (
        f"rollout mismatch: max err {jnp.max(jnp.abs(traj - traj_ref))}")

    print("KERNEL_OK")
</pallas_src>

<mosaic_0001>
module attributes {stable_mosaic.version = 11 : i64} {
  func.func @ode_func_kernel(%arg0: memref<8x128xf32, #tpu.memory_space<vmem>>, %arg1: memref<128x512xf32, #tpu.memory_space<vmem>>, %arg2: memref<1x512xf32, #tpu.memory_space<vmem>>, %arg3: memref<512x512xbf16, #tpu.memory_space<vmem>>, %arg4: memref<1x512xf32, #tpu.memory_space<vmem>>, %arg5: memref<512x128xbf16, #tpu.memory_space<vmem>>, %arg6: memref<1x128xf32, #tpu.memory_space<vmem>>, %arg7: memref<8x128xf32, #tpu.memory_space<vmem>>) attributes {dimension_semantics = [], scalar_prefetch = 0 : i64, scratch_operands = 0 : i64, tpu.core_type = #tpu.core_type<tc>} {
    %c0 = arith.constant 0 : index
    %c0_0 = arith.constant 0 : index
    %0 = vector.load %arg0[%c0, %c0_0] : memref<8x128xf32, #tpu.memory_space<vmem>>, vector<8x128xf32>
    %c0_1 = arith.constant 0 : index
    %c0_2 = arith.constant 0 : index
    %1 = vector.load %arg1[%c0_1, %c0_2] : memref<128x512xf32, #tpu.memory_space<vmem>>, vector<128x512xf32>
    %c0_3 = arith.constant 0 : index
    %c0_4 = arith.constant 0 : index
    %2 = vector.load %arg2[%c0_3, %c0_4] : memref<1x512xf32, #tpu.memory_space<vmem>>, vector<1x512xf32>
    %c0_5 = arith.constant 0 : index
    %c0_6 = arith.constant 0 : index
    %3 = vector.load %arg3[%c0_5, %c0_6] : memref<512x512xbf16, #tpu.memory_space<vmem>>, vector<512x512xbf16>
    %c0_7 = arith.constant 0 : index
    %c0_8 = arith.constant 0 : index
    %4 = vector.load %arg4[%c0_7, %c0_8] : memref<1x512xf32, #tpu.memory_space<vmem>>, vector<1x512xf32>
    %c0_9 = arith.constant 0 : index
    %c0_10 = arith.constant 0 : index
    %5 = vector.load %arg5[%c0_9, %c0_10] : memref<512x128xbf16, #tpu.memory_space<vmem>>, vector<512x128xbf16>
    %c0_11 = arith.constant 0 : index
    %c0_12 = arith.constant 0 : index
    %6 = vector.load %arg6[%c0_11, %c0_12] : memref<1x128xf32, #tpu.memory_space<vmem>>, vector<1x128xf32>
    %cst = arith.constant dense<0.000000e+00> : vector<8x512xf32>
    %7 = tpu.matmul %0, %1, %cst {dimension_numbers = #tpu.dot_dimension_numbers<[1], [0], [0], [1], [0, 0, 1, 1], [], []>} : vector<8x128xf32>, vector<128x512xf32>, vector<8x512xf32> -> vector<8x512xf32>
    %8 = vector.broadcast %2 : vector<1x512xf32> to vector<8x512xf32>
    %9 = arith.addf %7, %8 : vector<8x512xf32>
    %10 = math.tanh %9 : vector<8x512xf32>
    %11 = arith.truncf %10 : vector<8x512xf32> to vector<8x512xbf16>
    %cst_13 = arith.constant dense<0.000000e+00> : vector<8x512xf32>
    %12 = tpu.matmul %11, %3, %cst_13 {dimension_numbers = #tpu.dot_dimension_numbers<[1], [0], [0], [1], [0, 0, 1, 1], [], []>} : vector<8x512xbf16>, vector<512x512xbf16>, vector<8x512xf32> -> vector<8x512xf32>
    %13 = vector.broadcast %4 : vector<1x512xf32> to vector<8x512xf32>
    %14 = arith.addf %12, %13 : vector<8x512xf32>
    %cst_14 = arith.constant 0.000000e+00 : f32
    %15 = vector.broadcast %cst_14 : f32 to vector<8x512xf32>
    %16 = arith.maximumf %14, %15 : vector<8x512xf32>
    %17 = arith.truncf %16 : vector<8x512xf32> to vector<8x512xbf16>
    %cst_15 = arith.constant dense<0.000000e+00> : vector<8x128xf32>
    %18 = tpu.matmul %17, %5, %cst_15 {dimension_numbers = #tpu.dot_dimension_numbers<[1], [0], [0], [1], [0, 0, 1, 1], [], []>} : vector<8x512xbf16>, vector<512x128xbf16>, vector<8x128xf32> -> vector<8x128xf32>
    %19 = vector.broadcast %6 : vector<1x128xf32> to vector<8x128xf32>
    %20 = arith.addf %18, %19 : vector<8x128xf32>
    %c0_16 = arith.constant 0 : index
    %c0_17 = arith.constant 0 : index
    %21 = vector.load %arg7[%c0_16, %c0_17] : memref<8x128xf32, #tpu.memory_space<vmem>>, vector<8x128xf32>
    tpu.vector_store %arg7[%c0_16, %c0_17], %20 {strides = array<i32>} : memref<8x128xf32, #tpu.memory_space<vmem>>, vector<8x128xf32>,
    return
  }
}

</mosaic_0001>

<llo_original>
// kernel: tpu_custom_call.1
$region0: #{tpu_custom_call.1}
  #allocation0 [shape = 'u32[]', space=smem, size = 0x4, offset = 0x4, fixed_abs, tag = 'smem constant byte address 0x4 - core index']
  #allocation1 [shape = 'u32[72,128]{1,0:T(1,128)}', space=vmem, size = 0x9000, scoped, tag = 'internal scratch']
  %s0 = inlined_call_operand.hbm [shape: f32[8,128], index: 0, kind: input, shape index: {}]
  %s1 = inlined_call_operand.hbm [shape: f32[128,512], index: 1, kind: input, shape index: {}]
  %s2 = inlined_call_operand.hbm [shape: f32[1,512], index: 2, kind: input, shape index: {}]
  %s3 = inlined_call_operand.hbm [shape: bf16[512,512], index: 3, kind: input, shape index: {}]
  %s4 = inlined_call_operand.hbm [shape: f32[1,512], index: 4, kind: input, shape index: {}]
  %s5 = inlined_call_operand.hbm [shape: bf16[512,128], index: 5, kind: input, shape index: {}]
  %s6 = inlined_call_operand.vmem [shape: f32[1,128], index: 6, kind: input, shape index: {}]
  %s7 = inlined_call_operand.hbm [shape: f32[8,128], index: 7, kind: output, shape index: {}]
  %s8 = sld [smem:[#allocation0]]
  $region62: #{tpu_custom_call.1} parent=0
    _
  %s10 = ssub.s32 1, %s8
  %s11 = scalar_select 0, %s10, %s8
  $region1: #{tpu_custom_call.1} parent=0
    #allocation2 [shape = 'u8[4096]{0}', space=vmem, size = 0x1000, scoped, tag = 'input window, operand 0, single buffered']
    #allocation3 [shape = 's32[1]{0}', space=sflag, size = 0x4, scoped, tag = 'scoped memory for tpu_custom_call.1']
    #allocation4 [shape = 's32[1]{0}', space=sflag, size = 0x4, scoped, tag = 'scoped memory for tpu_custom_call.1']
    #allocation5 [shape = 'u8[262144]{0}', space=vmem, size = 0x40000, scoped, tag = 'input window, operand 1, single buffered']
    #allocation6 [shape = 's32[1]{0}', space=sflag, size = 0x4, scoped, tag = 'scoped memory for tpu_custom_call.1']
    #allocation7 [shape = 'u8[2048]{0}', space=vmem, size = 0x800, scoped, tag = 'input window, operand 2, single buffered']
    #allocation8 [shape = 'u8[524288]{0}', space=vmem, size = 0x80000, scoped, tag = 'input window, operand 3, single buffered']
    #allocation9 [shape = 's32[1]{0}', space=sflag, size = 0x4, scoped, tag = 'scoped memory for tpu_custom_call.1']
    #allocation10 [shape = 'u8[2048]{0}', space=vmem, size = 0x800, scoped, tag = 'input window, operand 4, single buffered']
    #allocation11 [shape = 'u8[131072]{0}', space=vmem, size = 0x20000, scoped, tag = 'input window, operand 5, single buffered']
    #allocation12 [shape = 's32[1]{0}', space=sflag, size = 0x4, scoped, tag = 'scoped memory for tpu_custom_call.1']
    #allocation13 [shape = 'u8[4096]{0}', space=vmem, size = 0x1000, scoped, tag = 'output window, operand 0, single buffered']
    %12 = vsyncpa [#allocation3], 0
    %13 = vsyncpa [#allocation6], 0
    %14 = vsyncpa [#allocation9], 0
    %15 = vsyncpa [#allocation12], 0
    %16 = vsyncpa [#allocation4], 0
    // Predicated region
    $region2: #{tpu_custom_call.1} parent=1 // pred_check
      _
    $region3: #{tpu_custom_call.1} parent=1 // pred_check_branch
      %18 = sbr.rel (0) target = $region5
    $region4: #{tpu_custom_call.1} parent=1 // pred_region
      %20 = vsyncadd [#allocation3], 0
      %s22 = sshll.u32 %s0, 4
      %s23 = int_to_ptr.hbm [resolvable:$true] %s22
      %s24 = sshll.u32 [#allocation2], 4
      %s25 = int_to_ptr.vmem [resolvable:$true] %s24
      %27 = dma.hbm_to_vmem [thread:$0]  %s23, 128, %s25, [#allocation3]
    $region5: #{tpu_custom_call.1} parent=1 // pred_fallthru
      _
    // Predicated region
    $region6: #{tpu_custom_call.1} parent=1 // pred_check
      _
    $region7: #{tpu_custom_call.1} parent=1 // pred_check_branch
      %29 = sbr.rel (0) target = $region9
    $region8: #{tpu_custom_call.1} parent=1 // pred_region
      %31 = vsyncadd [#allocation6], 0
      %s32 = sshll.u32 %s1, 4
      %s33 = int_to_ptr.hbm [resolvable:$true] %s32
      %s34 = sshll.u32 [#allocation5], 4
      %s35 = int_to_ptr.vmem [resolvable:$true] %s34
      %40 = dma.hbm_to_vmem [thread:$0]  %s33, 8192, %s35, [#allocation6], 512, 512, 32
    $region9: #{tpu_custom_call.1} parent=1 // pred_fallthru
      _
    // Predicated region
    $region10: #{tpu_custom_call.1} parent=1 // pred_check
      _
    $region11: #{tpu_custom_call.1} parent=1 // pred_check_branch
      %42 = sbr.rel (0) target = $region13
    $region12: #{tpu_custom_call.1} parent=1 // pred_region
      %44 = vsyncadd [#allocation6], 0
      %s46 = sshll.u32 %s2, 4
      %s47 = int_to_ptr.hbm [resolvable:$true] %s46
      %s48 = sshll.u32 [#allocation7], 4
      %s49 = int_to_ptr.vmem [resolvable:$true] %s48
      %51 = dma.hbm_to_vmem [thread:$0]  %s47, 64, %s49, [#allocation6]
    $region13: #{tpu_custom_call.1} parent=1 // pred_fallthru
      _
    // Predicated region
    $region14: #{tpu_custom_call.1} parent=1 // pred_check
      _
    $region15: #{tpu_custom_call.1} parent=1 // pred_check_branch
      %53 = sbr.rel (0) target = $region17
    $region16: #{tpu_custom_call.1} parent=1 // pred_region
      %55 = vsyncadd [#allocation9], 0
      %s56 = sshll.u32 %s3, 4
      %s57 = int_to_ptr.hbm [resolvable:$true] %s56
      %s58 = sshll.u32 [#allocation8], 4
      %s59 = int_to_ptr.vmem [resolvable:$true] %s58
      %64 = dma.hbm_to_vmem [thread:$0]  %s57, 16384, %s59, [#allocation9], 256, 256, 16
    $region17: #{tpu_custom_call.1} parent=1 // pred_fallthru
      _
    // Predicated region
    $region18: #{tpu_custom_call.1} parent=1 // pred_check
      _
    $region19: #{tpu_custom_call.1} parent=1 // pred_check_branch
      %66 = sbr.rel (0) target = $region21
    $region20: #{tpu_custom_call.1} parent=1 // pred_region
      %68 = vsyncadd [#allocation9], 0
      %s70 = sshll.u32 %s4, 4
      %s71 = int_to_ptr.hbm [resolvable:$true] %s70
      %s72 = sshll.u32 [#allocation10], 4
      %s73 = int_to_ptr.vmem [resolvable:$true] %s72
      %75 = dma.hbm_to_vmem [thread:$0]  %s71, 64, %s73, [#allocation9]
    $region21: #{tpu_custom_call.1} parent=1 // pred_fallthru
      _
    // Predicated region
    $region22: #{tpu_custom_call.1} parent=1 // pred_check
      _
    $region23: #{tpu_custom_call.1} parent=1 // pred_check_branch
      %77 = sbr.rel (0) target = $region25
    $region24: #{tpu_custom_call.1} parent=1 // pred_region
      %79 = vsyncadd [#allocation12], 0
      %s80 = sshll.u32 %s5, 4
      %s81 = int_to_ptr.hbm [resolvable:$true] %s80
      %s82 = sshll.u32 [#allocation11], 4
      %s83 = int_to_ptr.vmem [resolvable:$true] %s82
      %88 = dma.hbm_to_vmem [thread:$0]  %s81, 4096, %s83, [#allocation12], 64, 64, 4
    $region25: #{tpu_custom_call.1} parent=1 // pred_fallthru
      _
    // Predicated region
    $region26: #{tpu_custom_call.1} parent=1 // pred_check
      _
    $region27: #{tpu_custom_call.1} parent=1 // pred_check_branch
      %90 = sbr.rel (0) target = $region29
    $region28: #{tpu_custom_call.1} parent=1 // pred_region
      _
    $region29: #{tpu_custom_call.1} parent=1 // pred_fallthru
      _
    // Predicated region
    $region30: #{tpu_custom_call.1} parent=1 // pred_check
      _
    $region31: #{tpu_custom_call.1} parent=1 // pred_check_branch
      %92 = sbr.rel (0) target = $region33
    $region32: #{tpu_custom_call.1} parent=1 // pred_region
      %94 = dma.done [#allocation3], 128
    $region33: #{tpu_custom_call.1} parent=1 // pred_fallthru
      _
    // Predicated region
    $region34: #{tpu_custom_call.1} parent=1 // pred_check
      _
    $region35: #{tpu_custom_call.1} parent=1 // pred_check_branch
      %96 = sbr.rel (0) target = $region37
    $region36: #{tpu_custom_call.1} parent=1 // pred_region
      %98 = dma.done [#allocation6], 8192
    $region37: #{tpu_custom_call.1} parent=1 // pred_fallthru
      _
    // Predicated region
    $region38: #{tpu_custom_call.1} parent=1 // pred_check
      _
    $region39: #{tpu_custom_call.1} parent=1 // pred_check_branch
      %100 = sbr.rel (0) target = $region41
    $region40: #{tpu_custom_call.1} parent=1 // pred_region
      %102 = dma.done [#allocation6], 64
    $region41: #{tpu_custom_call.1} parent=1 // pred_fallthru
      _
    // Predicated region
    $region42: #{tpu_custom_call.1} parent=1 // pred_check
      _
    $region43: #{tpu_custom_call.1} parent=1 // pred_check_branch
      %104 = sbr.rel (0) target = $region45
    $region44: #{tpu_custom_call.1} parent=1 // pred_region
      %106 = dma.done [#allocation9], 16384
    $region45: #{tpu_custom_call.1} parent=1 // pred_fallthru
      _
    // Predicated region
    $region46: #{tpu_custom_call.1} parent=1 // pred_check
      _
    $region47: #{tpu_custom_call.1} parent=1 // pred_check_branch
      %108 = sbr.rel (0) target = $region49
    $region48: #{tpu_custom_call.1} parent=1 // pred_region
      %110 = dma.done [#allocation9], 64
    $region49: #{tpu_custom_call.1} parent=1 // pred_fallthru
      _
    // Predicated region
    $region50: #{tpu_custom_call.1} parent=1 // pred_check
      _
    $region51: #{tpu_custom_call.1} parent=1 // pred_check_branch
      %112 = sbr.rel (0) target = $region53
    $region52: #{tpu_custom_call.1} parent=1 // pred_region
      %114 = dma.done [#allocation12], 4096
    $region53: #{tpu_custom_call.1} parent=1 // pred_fallthru
      _
    %v115 = vld [vmem:[#allocation2] sm:$0xff]
    %v116 = vld [vmem:[#allocation5] sm:$0xff]
    %v117 = vld [vmem:[#allocation5 + $0x8] sm:$0xff]
    %v118 = vld [vmem:[#allocation5 + $0x10] sm:$0xff]
    %v119 = vld [vmem:[#allocation5 + $0x18] sm:$0xff]
    %v120 = vld [vmem:[#allocation5 + $0x20] sm:$0xff]
    %v121 = vld [vmem:[#allocation5 + $0x28] sm:$0xff]
    %v122 = vld [vmem:[#allocation5 + $0x30] sm:$0xff]
    %v123 = vld [vmem:[#allocation5 + $0x38] sm:$0xff]
    %v124 = vld [vmem:[#allocation5 + $0x40] sm:$0xff]
    %v125 = vld [vmem:[#allocation5 + $0x48] sm:$0xff]
    %v126 = vld [vmem:[#allocation5 + $0x50] sm:$0xff]
    %v127 = vld [vmem:[#allocation5 + $0x58] sm:$0xff]
    %v128 = vld [vmem:[#allocation5 + $0x60] sm:$0xff]
    %v129 = vld [vmem:[#allocation5 + $0x68] sm:$0xff]
    %v130 = vld [vmem:[#allocation5 + $0x70] sm:$0xff]
    %v131 = vld [vmem:[#allocation5 + $0x78] sm:$0xff]
    %v132 = vld [vmem:[#allocation5 + $0x80] sm:$0xff]
    %v133 = vld [vmem:[#allocation5 + $0x88] sm:$0xff]
    %v134 = vld [vmem:[#allocation5 + $0x90] sm:$0xff]
    %v135 = vld [vmem:[#allocation5 + $0x98] sm:$0xff]
    %v136 = vld [vmem:[#allocation5 + $0xa0] sm:$0xff]
    %v137 = vld [vmem:[#allocation5 + $0xa8] sm:$0xff]
    %v138 = vld [vmem:[#allocation5 + $0xb0] sm:$0xff]
    %v139 = vld [vmem:[#allocation5 + $0xb8] sm:$0xff]
    %v140 = vld [vmem:[#allocation5 + $0xc0] sm:$0xff]
    %v141 = vld [vmem:[#allocation5 + $0xc8] sm:$0xff]
    %v142 = vld [vmem:[#allocation5 + $0xd0] sm:$0xff]
    %v143 = vld [vmem:[#allocation5 + $0xd8] sm:$0xff]
    %v144 = vld [vmem:[#allocation5 + $0xe0] sm:$0xff]
    %v145 = vld [vmem:[#allocation5 + $0xe8] sm:$0xff]
    %v146 = vld [vmem:[#allocation5 + $0xf0] sm:$0xff]
    %v147 = vld [vmem:[#allocation5 + $0xf8] sm:$0xff]
    %v148 = vld [vmem:[#allocation5 + $0x100] sm:$0xff]
    %v149 = vld [vmem:[#allocation5 + $0x108] sm:$0xff]
    %v150 = vld [vmem:[#allocation5 + $0x110] sm:$0xff]
    %v151 = vld [vmem:[#allocation5 + $0x118] sm:$0xff]
    %v152 = vld [vmem:[#allocation5 + $0x120] sm:$0xff]
    %v153 = vld [vmem:[#allocation5 + $0x128] sm:$0xff]
    %v154 = vld [vmem:[#allocation5 + $0x130] sm:$0xff]
    %v155 = vld [vmem:[#allocation5 + $0x138] sm:$0xff]
    %v156 = vld [vmem:[#allocation5 + $0x140] sm:$0xff]
    %v157 = vld [vmem:[#allocation5 + $0x148] sm:$0xff]
    %v158 = vld [vmem:[#allocation5 + $0x150] sm:$0xff]
    %v159 = vld [vmem:[#allocation5 + $0x158] sm:$0xff]
    %v160 = vld [vmem:[#allocation5 + $0x160] sm:$0xff]
    %v161 = vld [vmem:[#allocation5 + $0x168] sm:$0xff]
    %v162 = vld [vmem:[#allocation5 + $0x170] sm:$0xff]
    %v163 = vld [vmem:[#allocation5 + $0x178] sm:$0xff]
    %v164 = vld [vmem:[#allocation5 + $0x180] sm:$0xff]
    %v165 = vld [vmem:[#allocation5 + $0x188] sm:$0xff]
    %v166 = vld [vmem:[#allocation5 + $0x190] sm:$0xff]
    %v167 = vld [vmem:[#allocation5 + $0x198] sm:$0xff]
    %v168 = vld [vmem:[#allocation5 + $0x1a0] sm:$0xff]
    %v169 = vld [vmem:[#allocation5 + $0x1a8] sm:$0xff]
    %v170 = vld [vmem:[#allocation5 + $0x1b0] sm:$0xff]
    %v171 = vld [vmem:[#allocation5 + $0x1b8] sm:$0xff]
    %v172 = vld [vmem:[#allocation5 + $0x1c0] sm:$0xff]
    %v173 = vld [vmem:[#allocation5 + $0x1c8] sm:$0xff]
    %v174 = vld [vmem:[#allocation5 + $0x1d0] sm:$0xff]
    %v175 = vld [vmem:[#allocation5 + $0x1d8] sm:$0xff]
    %v176 = vld [vmem:[#allocation5 + $0x1e0] sm:$0xff]
    %v177 = vld [vmem:[#allocation5 + $0x1e8] sm:$0xff]
    %v178 = vld [vmem:[#allocation5 + $0x1f0] sm:$0xff]
    %v179 = vld [vmem:[#allocation5 + $0x1f8] sm:$0xff]
    %v180 = vld [vmem:[#allocation7] sm:$0xf]
    %v181 = vld [vmem:[#allocation8] sm:$0xff]
    %v182 = vld [vmem:[#allocation8 + $0x8] sm:$0xff]
    %v183 = vld [vmem:[#allocation8 + $0x10] sm:$0xff]
    %v184 = vld [vmem:[#allocation8 + $0x18] sm:$0xff]
    %v185 = vld [vmem:[#allocation8 + $0x20] sm:$0xff]
    %v186 = vld [vmem:[#allocation8 + $0x28] sm:$0xff]
    %v187 = vld [vmem:[#allocation8 + $0x30] sm:$0xff]
    %v188 = vld [vmem:[#allocation8 + $0x38] sm:$0xff]
    %v189 = vld [vmem:[#allocation8 + $0x40] sm:$0xff]
    %v190 = vld [vmem:[#allocation8 + $0x48] sm:$0xff]
    %v191 = vld [vmem:[#allocation8 + $0x50] sm:$0xff]
    %v192 = vld [vmem:[#allocation8 + $0x58] sm:$0xff]
    %v193 = vld [vmem:[#allocation8 + $0x60] sm:$0xff]
    %v194 = vld [vmem:[#allocation8 + $0x68] sm:$0xff]
    %v195 = vld [vmem:[#allocation8 + $0x70] sm:$0xff]
    %v196 = vld [vmem:[#allocation8 + $0x78] sm:$0xff]
    %v197 = vld [vmem:[#allocation8 + $0x80] sm:$0xff]
    %v198 = vld [vmem:[#allocation8 + $0x88] sm:$0xff]
    %v199 = vld [vmem:[#allocation8 + $0x90] sm:$0xff]
    %v200 = vld [vmem:[#allocation8 + $0x98] sm:$0xff]
    %v201 = vld [vmem:[#allocation8 + $0xa0] sm:$0xff]
    %v202 = vld [vmem:[#allocation8 + $0xa8] sm:$0xff]
    %v203 = vld [vmem:[#allocation8 + $0xb0] sm:$0xff]
    %v204 = vld [vmem:[#allocation8 + $0xb8] sm:$0xff]
    %v205 = vld [vmem:[#allocation8 + $0xc0] sm:$0xff]
    %v206 = vld [vmem:[#allocation8 + $0xc8] sm:$0xff]
    %v207 = vld [vmem:[#allocation8 + $0xd0] sm:$0xff]
    %v208 = vld [vmem:[#allocation8 + $0xd8] sm:$0xff]
    %v209 = vld [vmem:[#allocation8 + $0xe0] sm:$0xff]
    %v210 = vld [vmem:[#allocation8 + $0xe8] sm:$0xff]
    %v211 = vld [vmem:[#allocation8 + $0xf0] sm:$0xff]
    %v212 = vld [vmem:[#allocation8 + $0xf8] sm:$0xff]
    %v213 = vld [vmem:[#allocation8 + $0x100] sm:$0xff]
    %v214 = vld [vmem:[#allocation8 + $0x108] sm:$0xff]
    %v215 = vld [vmem:[#allocation8 + $0x110] sm:$0xff]
    %v216 = vld [vmem:[#allocation8 + $0x118] sm:$0xff]
    %v217 = vld [vmem:[#allocation8 + $0x120] sm:$0xff]
    %v218 = vld [vmem:[#allocation8 + $0x128] sm:$0xff]
    %v219 = vld [vmem:[#allocation8 + $0x130] sm:$0xff]
    %v220 = vld [vmem:[#allocation8 + $0x138] sm:$0xff]
    %v221 = vld [vmem:[#allocation8 + $0x140] sm:$0xff]
    %v222 = vld [vmem:[#allocation8 + $0x148] sm:$0xff]
    %v223 = vld [vmem:[#allocation8 + $0x150] sm:$0xff]
    %v224 = vld [vmem:[#allocation8 + $0x158] sm:$0xff]
    %v225 = vld [vmem:[#allocation8 + $0x160] sm:$0xff]
    %v226 = vld [vmem:[#allocation8 + $0x168] sm:$0xff]
    %v227 = vld [vmem:[#allocation8 + $0x170] sm:$0xff]
    %v228 = vld [vmem:[#allocation8 + $0x178] sm:$0xff]
    %v229 = vld [vmem:[#allocation8 + $0x180] sm:$0xff]
    %v230 = vld [vmem:[#allocation8 + $0x188] sm:$0xff]
    %v231 = vld [vmem:[#allocation8 + $0x190] sm:$0xff]
    %v232 = vld [vmem:[#allocation8 + $0x198] sm:$0xff]
    %v233 = vld [vmem:[#allocation8 + $0x1a0] sm:$0xff]
    %v234 = vld [vmem:[#allocation8 + $0x1a8] sm:$0xff]
    %v235 = vld [vmem:[#allocation8 + $0x1b0] sm:$0xff]
    %v236 = vld [vmem:[#allocation8 + $0x1b8] sm:$0xff]
    %v237 = vld [vmem:[#allocation8 + $0x1c0] sm:$0xff]
    %v238 = vld [vmem:[#allocation8 + $0x1c8] sm:$0xff]
    %v239 = vld [vmem:[#allocation8 + $0x1d0] sm:$0xff]
    %v240 = vld [vmem:[#allocation8 + $0x1d8] sm:$0xff]
    %v241 = vld [vmem:[#allocation8 + $0x1e0] sm:$0xff]
    %v242 = vld [vmem:[#allocation8 + $0x1e8] sm:$0xff]
    %v243 = vld [vmem:[#allocation8 + $0x1f0] sm:$0xff]
    %v244 = vld [vmem:[#allocation8 + $0x1f8] sm:$0xff]
    %v245 = vld [vmem:[#allocation8 + $0x200] sm:$0xff]
    %v246 = vld [vmem:[#allocation8 + $0x208] sm:$0xff]
    %v247 = vld [vmem:[#allocation8 + $0x210] sm:$0xff]
    %v248 = vld [vmem:[#allocation8 + $0x218] sm:$0xff]
    %v249 = vld [vmem:[#allocation8 + $0x220] sm:$0xff]
    %v250 = vld [vmem:[#allocation8 + $0x228] sm:$0xff]
    %v251 = vld [vmem:[#allocation8 + $0x230] sm:$0xff]
    %v252 = vld [vmem:[#allocation8 + $0x238] sm:$0xff]
    %v253 = vld [vmem:[#allocation8 + $0x240] sm:$0xff]
    %v254 = vld [vmem:[#allocation8 + $0x248] sm:$0xff]
    %v255 = vld [vmem:[#allocation8 + $0x250] sm:$0xff]
    %v256 = vld [vmem:[#allocation8 + $0x258] sm:$0xff]
    %v257 = vld [vmem:[#allocation8 + $0x260] sm:$0xff]
    %v258 = vld [vmem:[#allocation8 + $0x268] sm:$0xff]
    %v259 = vld [vmem:[#allocation8 + $0x270] sm:$0xff]
    %v260 = vld [vmem:[#allocation8 + $0x278] sm:$0xff]
    %v261 = vld [vmem:[#allocation8 + $0x280] sm:$0xff]
    %v262 = vld [vmem:[#allocation8 + $0x288] sm:$0xff]
    %v263 = vld [vmem:[#allocation8 + $0x290] sm:$0xff]
    %v264 = vld [vmem:[#allocation8 + $0x298] sm:$0xff]
    %v265 = vld [vmem:[#allocation8 + $0x2a0] sm:$0xff]
    %v266 = vld [vmem:[#allocation8 + $0x2a8] sm:$0xff]
    %v267 = vld [vmem:[#allocation8 + $0x2b0] sm:$0xff]
    %v268 = vld [vmem:[#allocation8 + $0x2b8] sm:$0xff]
    %v269 = vld [vmem:[#allocation8 + $0x2c0] sm:$0xff]
    %v270 = vld [vmem:[#allocation8 + $0x2c8] sm:$0xff]
    %v271 = vld [vmem:[#allocation8 + $0x2d0] sm:$0xff]
    %v272 = vld [vmem:[#allocation8 + $0x2d8] sm:$0xff]
    %v273 = vld [vmem:[#allocation8 + $0x2e0] sm:$0xff]
    %v274 = vld [vmem:[#allocation8 + $0x2e8] sm:$0xff]
    %v275 = vld [vmem:[#allocation8 + $0x2f0] sm:$0xff]
    %v276 = vld [vmem:[#allocation8 + $0x2f8] sm:$0xff]
    %v277 = vld [vmem:[#allocation8 + $0x300] sm:$0xff]
    %v278 = vld [vmem:[#allocation8 + $0x308] sm:$0xff]
    %v279 = vld [vmem:[#allocation8 + $0x310] sm:$0xff]
    %v280 = vld [vmem:[#allocation8 + $0x318] sm:$0xff]
    %v281 = vld [vmem:[#allocation8 + $0x320] sm:$0xff]
    %v282 = vld [vmem:[#allocation8 + $0x328] sm:$0xff]
    %v283 = vld [vmem:[#allocation8 + $0x330] sm:$0xff]
    %v284 = vld [vmem:[#allocation8 + $0x338] sm:$0xff]
    %v285 = vld [vmem:[#allocation8 + $0x340] sm:$0xff]
    %v286 = vld [vmem:[#allocation8 + $0x348] sm:$0xff]
    %v287 = vld [vmem:[#allocation8 + $0x350] sm:$0xff]
    %v288 = vld [vmem:[#allocation8 + $0x358] sm:$0xff]
    %v289 = vld [vmem:[#allocation8 + $0x360] sm:$0xff]
    %v290 = vld [vmem:[#allocation8 + $0x368] sm:$0xff]
    %v291 = vld [vmem:[#allocation8 + $0x370] sm:$0xff]
    %v292 = vld [vmem:[#allocation8 + $0x378] sm:$0xff]
    %v293 = vld [vmem:[#allocation8 + $0x380] sm:$0xff]
    %v294 = vld [vmem:[#allocation8 + $0x388] sm:$0xff]
    %v295 = vld [vmem:[#allocation8 + $0x390] sm:$0xff]
    %v296 = vld [vmem:[#allocation8 + $0x398] sm:$0xff]
    %v297 = vld [vmem:[#allocation8 + $0x3a0] sm:$0xff]
    %v298 = vld [vmem:[#allocation8 + $0x3a8] sm:$0xff]
    %v299 = vld [vmem:[#allocation8 + $0x3b0] sm:$0xff]
    %v300 = vld [vmem:[#allocation8 + $0x3b8] sm:$0xff]
    %v301 = vld [vmem:[#allocation8 + $0x3c0] sm:$0xff]
    %v302 = vld [vmem:[#allocation8 + $0x3c8] sm:$0xff]
    %v303 = vld [vmem:[#allocation8 + $0x3d0] sm:$0xff]
    %v304 = vld [vmem:[#allocation8 + $0x3d8] sm:$0xff]
    %v305 = vld [vmem:[#allocation8 + $0x3e0] sm:$0xff]
    %v306 = vld [vmem:[#allocation8 + $0x3e8] sm:$0xff]
    %v307 = vld [vmem:[#allocation8 + $0x3f0] sm:$0xff]
    %v308 = vld [vmem:[#allocation8 + $0x3f8] sm:$0xff]
    %v309 = vld [vmem:[#allocation10] sm:$0xf]
    %v310 = vld [vmem:[#allocation11] sm:$0xf]
    %v311 = vld [vmem:[#allocation11 + $0x4] sm:$0xf]
    %v312 = vld [vmem:[#allocation11 + $0x8] sm:$0xf]
    %v313 = vld [vmem:[#allocation11 + $0xc] sm:$0xf]
    %v314 = vld [vmem:[#allocation11 + $0x10] sm:$0xf]
    %v315 = vld [vmem:[#allocation11 + $0x14] sm:$0xf]
    %v316 = vld [vmem:[#allocation11 + $0x18] sm:$0xf]
    %v317 = vld [vmem:[#allocation11 + $0x1c] sm:$0xf]
    %v318 = vld [vmem:[#allocation11 + $0x20] sm:$0xf]
    %v319 = vld [vmem:[#allocation11 + $0x24] sm:$0xf]
    %v320 = vld [vmem:[#allocation11 + $0x28] sm:$0xf]
    %v321 = vld [vmem:[#allocation11 + $0x2c] sm:$0xf]
    %v322 = vld [vmem:[#allocation11 + $0x30] sm:$0xf]
    %v323 = vld [vmem:[#allocation11 + $0x34] sm:$0xf]
    %v324 = vld [vmem:[#allocation11 + $0x38] sm:$0xf]
    %v325 = vld [vmem:[#allocation11 + $0x3c] sm:$0xf]
    %v326 = vld [vmem:[#allocation11 + $0x40] sm:$0xf]
    %v327 = vld [vmem:[#allocation11 + $0x44] sm:$0xf]
    %v328 = vld [vmem:[#allocation11 + $0x48] sm:$0xf]
    %v329 = vld [vmem:[#allocation11 + $0x4c] sm:$0xf]
    %v330 = vld [vmem:[#allocation11 + $0x50] sm:$0xf]
    %v331 = vld [vmem:[#allocation11 + $0x54] sm:$0xf]
    %v332 = vld [vmem:[#allocation11 + $0x58] sm:$0xf]
    %v333 = vld [vmem:[#allocation11 + $0x5c] sm:$0xf]
    %v334 = vld [vmem:[#allocation11 + $0x60] sm:$0xf]
    %v335 = vld [vmem:[#allocation11 + $0x64] sm:$0xf]
    %v336 = vld [vmem:[#allocation11 + $0x68] sm:$0xf]
    %v337 = vld [vmem:[#allocation11 + $0x6c] sm:$0xf]
    %v338 = vld [vmem:[#allocation11 + $0x70] sm:$0xf]
    %v339 = vld [vmem:[#allocation11 + $0x74] sm:$0xf]
    %v340 = vld [vmem:[#allocation11 + $0x78] sm:$0xf]
    %v341 = vld [vmem:[#allocation11 + $0x7c] sm:$0xf]
    %v342 = vld [vmem:[#allocation11 + $0x80] sm:$0xf]
    %v343 = vld [vmem:[#allocation11 + $0x84] sm:$0xf]
    %v344 = vld [vmem:[#allocation11 + $0x88] sm:$0xf]
    %v345 = vld [vmem:[#allocation11 + $0x8c] sm:$0xf]
    %v346 = vld [vmem:[#allocation11 + $0x90] sm:$0xf]
    %v347 = vld [vmem:[#allocation11 + $0x94] sm:$0xf]
    %v348 = vld [vmem:[#allocation11 + $0x98] sm:$0xf]
    %v349 = vld [vmem:[#allocation11 + $0x9c] sm:$0xf]
    %v350 = vld [vmem:[#allocation11 + $0xa0] sm:$0xf]
    %v351 = vld [vmem:[#allocation11 + $0xa4] sm:$0xf]
    %v352 = vld [vmem:[#allocation11 + $0xa8] sm:$0xf]
    %v353 = vld [vmem:[#allocation11 + $0xac] sm:$0xf]
    %v354 = vld [vmem:[#allocation11 + $0xb0] sm:$0xf]
    %v355 = vld [vmem:[#allocation11 + $0xb4] sm:$0xf]
    %v356 = vld [vmem:[#allocation11 + $0xb8] sm:$0xf]
    %v357 = vld [vmem:[#allocation11 + $0xbc] sm:$0xf]
    %v358 = vld [vmem:[#allocation11 + $0xc0] sm:$0xf]
    %v359 = vld [vmem:[#allocation11 + $0xc4] sm:$0xf]
    %v360 = vld [vmem:[#allocation11 + $0xc8] sm:$0xf]
    %v361 = vld [vmem:[#allocation11 + $0xcc] sm:$0xf]
    %v362 = vld [vmem:[#allocation11 + $0xd0] sm:$0xf]
    %v363 = vld [vmem:[#allocation11 + $0xd4] sm:$0xf]
    %v364 = vld [vmem:[#allocation11 + $0xd8] sm:$0xf]
    %v365 = vld [vmem:[#allocation11 + $0xdc] sm:$0xf]
    %v366 = vld [vmem:[#allocation11 + $0xe0] sm:$0xf]
    %v367 = vld [vmem:[#allocation11 + $0xe4] sm:$0xf]
    %v368 = vld [vmem:[#allocation11 + $0xe8] sm:$0xf]
    %v369 = vld [vmem:[#allocation11 + $0xec] sm:$0xf]
    %v370 = vld [vmem:[#allocation11 + $0xf0] sm:$0xf]
    %v371 = vld [vmem:[#allocation11 + $0xf4] sm:$0xf]
    %v372 = vld [vmem:[#allocation11 + $0xf8] sm:$0xf]
    %v373 = vld [vmem:[#allocation11 + $0xfc] sm:$0xf]
    %v374 = vld [vmem:[%s6] sm:$0x1]
    %v376 = vperm.slane %v180, 0
    %v377 = vperm.slane %v180, 1
    %v378 = vperm.slane %v180, 2
    %v379 = vperm.slane %v180, 3
    %384 = vmatpush.msra.mxu0 %v176
    %385 = vmatpush.msra.mxu0 %v172
    %386 = vmatpush.msra.mxu0 %v168
    %387 = vmatpush.msra.mxu0 %v164
    %388 = vmatpush.msra.mxu0 %v160
    %389 = vmatpush.msra.mxu0 %v156
    %390 = vmatpush.msra.mxu0 %v152
    %391 = vmatpush.msra.mxu0 %v148
    %392 = vmatpush.msra.mxu0 %v144
    %393 = vmatpush.msra.mxu0 %v140
    %394 = vmatpush.msra.mxu0 %v136
    %395 = vmatpush.msra.mxu0 %v132
    %396 = vmatpush.msra.mxu0 %v128
    %397 = vmatpush.msra.mxu0 %v124
    %398 = vmatpush.msra.mxu0 %v120
    %399 = vmatpush.msra.mxu0 %v116
    %400 = vmatmul.f32.gmra.mxu0 %v115
    %v401 = vpop.f32.mrf.mxu0
    %v402 = vadd.f32 %v376, %v401
    %403 = vdwg.mxu0
    %404 = vmatpush.msra.mxu0 %v177
    %405 = vmatpush.msra.mxu0 %v173
    %406 = vmatpush.msra.mxu0 %v169
    %407 = vmatpush.msra.mxu0 %v165
    %408 = vmatpush.msra.mxu0 %v161
    %409 = vmatpush.msra.mxu0 %v157
    %410 = vmatpush.msra.mxu0 %v153
    %411 = vmatpush.msra.mxu0 %v149
    %412 = vmatpush.msra.mxu0 %v145
    %413 = vmatpush.msra.mxu0 %v141
    %414 = vmatpush.msra.mxu0 %v137
    %415 = vmatpush.msra.mxu0 %v133
    %416 = vmatpush.msra.mxu0 %v129
    %417 = vmatpush.msra.mxu0 %v125
    %418 = vmatpush.msra.mxu0 %v121
    %419 = vmatpush.msra.mxu0 %v117
    %420 = vmatmul.f32.gmra.mxu0 %v115
    %v421 = vpop.f32.mrf.mxu0
    %v422 = vadd.f32 %v377, %v421
    %423 = vdwg.mxu0
    %424 = vmatpush.msra.mxu0 %v178
    %425 = vmatpush.msra.mxu0 %v174
    %426 = vmatpush.msra.mxu0 %v170
    %427 = vmatpush.msra.mxu0 %v166
    %428 = vmatpush.msra.mxu0 %v162
    %429 = vmatpush.msra.mxu0 %v158
    %430 = vmatpush.msra.mxu0 %v154
    %431 = vmatpush.msra.mxu0 %v150
    %432 = vmatpush.msra.mxu0 %v146
    %433 = vmatpush.msra.mxu0 %v142
    %434 = vmatpush.msra.mxu0 %v138
    %435 = vmatpush.msra.mxu0 %v134
    %436 = vmatpush.msra.mxu0 %v130
    %437 = vmatpush.msra.mxu0 %v126
    %438 = vmatpush.msra.mxu0 %v122
    %439 = vmatpush.msra.mxu0 %v118
    %440 = vmatmul.f32.gmra.mxu0 %v115
    %v441 = vpop.f32.mrf.mxu0
    %v442 = vadd.f32 %v378, %v441
    %443 = vdwg.mxu0
    %444 = vmatpush.msra.mxu0 %v179
    %445 = vmatpush.msra.mxu0 %v175
    %446 = vmatpush.msra.mxu0 %v171
    %447 = vmatpush.msra.mxu0 %v167
    %448 = vmatpush.msra.mxu0 %v163
    %449 = vmatpush.msra.mxu0 %v159
    %450 = vmatpush.msra.mxu0 %v155
    %451 = vmatpush.msra.mxu0 %v151
    %452 = vmatpush.msra.mxu0 %v147
    %453 = vmatpush.msra.mxu0 %v143
    %454 = vmatpush.msra.mxu0 %v139
    %455 = vmatpush.msra.mxu0 %v135
    %456 = vmatpush.msra.mxu0 %v131
    %457 = vmatpush.msra.mxu0 %v127
    %458 = vmatpush.msra.mxu0 %v123
    %459 = vmatpush.msra.mxu0 %v119
    %460 = vmatmul.f32.gmra.mxu0 %v115
    %v461 = vpop.f32.mrf.mxu0
    %v462 = vadd.f32 %v379, %v461
    %463 = vdwg.mxu0
    %v464 = vtanh.pop %v402
    %v465 = vtanh.pop %v422
    %v466 = vtanh.pop %v442
    %v467 = vtanh.pop %v462
    %v468 = vpack.c.bf16 %v464, %v464
    %v469 = vpack.c.bf16 %v465, %v465
    %v470 = vpack.c.bf16 %v466, %v466
    %v471 = vpack.c.bf16 %v467, %v467
    %v473 = vperm.slane %v309, 0
    %v474 = vperm.slane %v309, 1
    %v475 = vperm.slane %v309, 2
    %v476 = vperm.slane %v309, 3
    %v609 = vunpack.c.l.b16 %v181
    %v610 = vunpack.c.h.b16 %v181
    %v611 = vunpack.c.l.b16 %v182
    %v612 = vunpack.c.h.b16 %v182
    %v613 = vunpack.c.l.b16 %v183
    %v614 = vunpack.c.h.b16 %v183
    %v615 = vunpack.c.l.b16 %v184
    %v616 = vunpack.c.h.b16 %v184
    %v617 = vunpack.c.l.b16 %v185
    %v618 = vunpack.c.h.b16 %v185
    %v619 = vunpack.c.l.b16 %v186
    %v620 = vunpack.c.h.b16 %v186
    %v621 = vunpack.c.l.b16 %v187
    %v622 = vunpack.c.h.b16 %v187
    %v623 = vunpack.c.l.b16 %v188
    %v624 = vunpack.c.h.b16 %v188
    %v625 = vunpack.c.l.b16 %v189
    %v626 = vunpack.c.h.b16 %v189
    %v627 = vunpack.c.l.b16 %v190
    %v628 = vunpack.c.h.b16 %v190
    %v629 = vunpack.c.l.b16 %v191
    %v630 = vunpack.c.h.b16 %v191
    %v631 = vunpack.c.l.b16 %v192
    %v632 = vunpack.c.h.b16 %v192
    %v633 = vunpack.c.l.b16 %v193
    %v634 = vunpack.c.h.b16 %v193
    %v635 = vunpack.c.l.b16 %v194
    %v636 = vunpack.c.h.b16 %v194
    %v637 = vunpack.c.l.b16 %v195
    %v638 = vunpack.c.h.b16 %v195
    %v639 = vunpack.c.l.b16 %v196
    %v640 = vunpack.c.h.b16 %v196
    %v641 = vunpack.c.l.b16 %v197
    %v642 = vunpack.c.h.b16 %v197
    %v643 = vunpack.c.l.b16 %v198
    %v644 = vunpack.c.h.b16 %v198
    %v645 = vunpack.c.l.b16 %v199
    %v646 = vunpack.c.h.b16 %v199
    %v647 = vunpack.c.l.b16 %v200
    %v648 = vunpack.c.h.b16 %v200
    %v649 = vunpack.c.l.b16 %v201
    %v650 = vunpack.c.h.b16 %v201
    %v651 = vunpack.c.l.b16 %v202
    %v652 = vunpack.c.h.b16 %v202
    %v653 = vunpack.c.l.b16 %v203
    %v654 = vunpack.c.h.b16 %v203
    %v655 = vunpack.c.l.b16 %v204
    %v656 = vunpack.c.h.b16 %v204
    %v657 = vunpack.c.l.b16 %v205
    %v658 = vunpack.c.h.b16 %v205
    %v659 = vunpack.c.l.b16 %v206
    %v660 = vunpack.c.h.b16 %v206
    %v661 = vunpack.c.l.b16 %v207
    %v662 = vunpack.c.h.b16 %v207
    %v663 = vunpack.c.l.b16 %v208
    %v664 = vunpack.c.h.b16 %v208
    %v665 = vunpack.c.l.b16 %v209
    %v666 = vunpack.c.h.b16 %v209
    %v667 = vunpack.c.l.b16 %v210
    %v668 = vunpack.c.h.b16 %v210
    %v669 = vunpack.c.l.b16 %v211
    %v670 = vunpack.c.h.b16 %v211
    %v671 = vunpack.c.l.b16 %v212
    %v672 = vunpack.c.h.b16 %v212
    %v673 = vunpack.c.l.b16 %v213
    %v674 = vunpack.c.h.b16 %v213
    %v675 = vunpack.c.l.b16 %v214
    %v676 = vunpack.c.h.b16 %v214
    %v677 = vunpack.c.l.b16 %v215
    %v678 = vunpack.c.h.b16 %v215
    %v679 = vunpack.c.l.b16 %v216
    %v680 = vunpack.c.h.b16 %v216
    %v681 = vunpack.c.l.b16 %v217
    %v682 = vunpack.c.h.b16 %v217
    %v683 = vunpack.c.l.b16 %v218
    %v684 = vunpack.c.h.b16 %v218
    %v685 = vunpack.c.l.b16 %v219
    %v686 = vunpack.c.h.b16 %v219
    %v687 = vunpack.c.l.b16 %v220
    %v688 = vunpack.c.h.b16 %v220
    %v689 = vunpack.c.l.b16 %v221
    %v690 = vunpack.c.h.b16 %v221
    %v691 = vunpack.c.l.b16 %v222
    %v692 = vunpack.c.h.b16 %v222
    %v693 = vunpack.c.l.b16 %v223
    %v694 = vunpack.c.h.b16 %v223
    %v695 = vunpack.c.l.b16 %v224
    %v696 = vunpack.c.h.b16 %v224
    %v697 = vunpack.c.l.b16 %v225
    %v698 = vunpack.c.h.b16 %v225
    %v699 = vunpack.c.l.b16 %v226
    %v700 = vunpack.c.h.b16 %v226
    %v701 = vunpack.c.l.b16 %v227
    %v702 = vunpack.c.h.b16 %v227
    %v703 = vunpack.c.l.b16 %v228
    %v704 = vunpack.c.h.b16 %v228
    %v705 = vunpack.c.l.b16 %v229
    %v706 = vunpack.c.h.b16 %v229
    %v707 = vunpack.c.l.b16 %v230
    %v708 = vunpack.c.h.b16 %v230
    %v709 = vunpack.c.l.b16 %v231
    %v710 = vunpack.c.h.b16 %v231
    %v711 = vunpack.c.l.b16 %v232
    %v712 = vunpack.c.h.b16 %v232
    %v713 = vunpack.c.l.b16 %v233
    %v714 = vunpack.c.h.b16 %v233
    %v715 = vunpack.c.l.b16 %v234
    %v716 = vunpack.c.h.b16 %v234
    %v717 = vunpack.c.l.b16 %v235
    %v718 = vunpack.c.h.b16 %v235
    %v719 = vunpack.c.l.b16 %v236
    %v720 = vunpack.c.h.b16 %v236
    %v721 = vunpack.c.l.b16 %v237
    %v722 = vunpack.c.h.b16 %v237
    %v723 = vunpack.c.l.b16 %v238
    %v724 = vunpack.c.h.b16 %v238
    %v725 = vunpack.c.l.b16 %v239
    %v726 = vunpack.c.h.b16 %v239
    %v727 = vunpack.c.l.b16 %v240
    %v728 = vunpack.c.h.b16 %v240
    %v729 = vunpack.c.l.b16 %v241
    %v730 = vunpack.c.h.b16 %v241
    %v731 = vunpack.c.l.b16 %v242
    %v732 = vunpack.c.h.b16 %v242
    %v733 = vunpack.c.l.b16 %v243
    %v734 = vunpack.c.h.b16 %v243
    %v735 = vunpack.c.l.b16 %v244
    %v736 = vunpack.c.h.b16 %v244
    %v737 = vunpack.c.l.b16 %v245
    %v738 = vunpack.c.h.b16 %v245
    %v739 = vunpack.c.l.b16 %v246
    %v740 = vunpack.c.h.b16 %v246
    %v741 = vunpack.c.l.b16 %v247
    %v742 = vunpack.c.h.b16 %v247
    %v743 = vunpack.c.l.b16 %v248
    %v744 = vunpack.c.h.b16 %v248
    %v745 = vunpack.c.l.b16 %v249
    %v746 = vunpack.c.h.b16 %v249
    %v747 = vunpack.c.l.b16 %v250
    %v748 = vunpack.c.h.b16 %v250
    %v749 = vunpack.c.l.b16 %v251
    %v750 = vunpack.c.h.b16 %v251
    %v751 = vunpack.c.l.b16 %v252
    %v752 = vunpack.c.h.b16 %v252
    %v753 = vunpack.c.l.b16 %v253
    %v754 = vunpack.c.h.b16 %v253
    %v755 = vunpack.c.l.b16 %v254
    %v756 = vunpack.c.h.b16 %v254
    %v757 = vunpack.c.l.b16 %v255
    %v758 = vunpack.c.h.b16 %v255
    %v759 = vunpack.c.l.b16 %v256
    %v760 = vunpack.c.h.b16 %v256
    %v761 = vunpack.c.l.b16 %v257
    %v762 = vunpack.c.h.b16 %v257
    %v763 = vunpack.c.l.b16 %v258
    %v764 = vunpack.c.h.b16 %v258
    %v765 = vunpack.c.l.b16 %v259
    %v766 = vunpack.c.h.b16 %v259
    %v767 = vunpack.c.l.b16 %v260
    %v768 = vunpack.c.h.b16 %v260
    %v769 = vunpack.c.l.b16 %v261
    %v770 = vunpack.c.h.b16 %v261
    %v771 = vunpack.c.l.b16 %v262
    %v772 = vunpack.c.h.b16 %v262
    %v773 = vunpack.c.l.b16 %v263
    %v774 = vunpack.c.h.b16 %v263
    %v775 = vunpack.c.l.b16 %v264
    %v776 = vunpack.c.h.b16 %v264
    %v777 = vunpack.c.l.b16 %v265
    %v778 = vunpack.c.h.b16 %v265
    %v779 = vunpack.c.l.b16 %v266
    %v780 = vunpack.c.h.b16 %v266
    %v781 = vunpack.c.l.b16 %v267
    %v782 = vunpack.c.h.b16 %v267
    %v783 = vunpack.c.l.b16 %v268
    %v784 = vunpack.c.h.b16 %v268
    %v785 = vunpack.c.l.b16 %v269
    %v786 = vunpack.c.h.b16 %v269
    %v787 = vunpack.c.l.b16 %v270
    %v788 = vunpack.c.h.b16 %v270
    %v789 = vunpack.c.l.b16 %v271
    %v790 = vunpack.c.h.b16 %v271
    %v791 = vunpack.c.l.b16 %v272
    %v792 = vunpack.c.h.b16 %v272
    %v793 = vunpack.c.l.b16 %v273
    %v794 = vunpack.c.h.b16 %v273
    %v795 = vunpack.c.l.b16 %v274
    %v796 = vunpack.c.h.b16 %v274
    %v797 = vunpack.c.l.b16 %v275
    %v798 = vunpack.c.h.b16 %v275
    %v799 = vunpack.c.l.b16 %v276
    %v800 = vunpack.c.h.b16 %v276
    %v801 = vunpack.c.l.b16 %v277
    %v802 = vunpack.c.h.b16 %v277
    %v803 = vunpack.c.l.b16 %v278
    %v804 = vunpack.c.h.b16 %v278
    %v805 = vunpack.c.l.b16 %v279
    %v806 = vunpack.c.h.b16 %v279
    %v807 = vunpack.c.l.b16 %v280
    %v808 = vunpack.c.h.b16 %v280
    %v809 = vunpack.c.l.b16 %v281
    %v810 = vunpack.c.h.b16 %v281
    %v811 = vunpack.c.l.b16 %v282
    %v812 = vunpack.c.h.b16 %v282
    %v813 = vunpack.c.l.b16 %v283
    %v814 = vunpack.c.h.b16 %v283
    %v815 = vunpack.c.l.b16 %v284
    %v816 = vunpack.c.h.b16 %v284
    %v817 = vunpack.c.l.b16 %v285
    %v818 = vunpack.c.h.b16 %v285
    %v819 = vunpack.c.l.b16 %v286
    %v820 = vunpack.c.h.b16 %v286
    %v821 = vunpack.c.l.b16 %v287
    %v822 = vunpack.c.h.b16 %v287
    %v823 = vunpack.c.l.b16 %v288
    %v824 = vunpack.c.h.b16 %v288
    %v825 = vunpack.c.l.b16 %v289
    %v826 = vunpack.c.h.b16 %v289
    %v827 = vunpack.c.l.b16 %v290
    %v828 = vunpack.c.h.b16 %v290
    %v829 = vunpack.c.l.b16 %v291
    %v830 = vunpack.c.h.b16 %v291
    %v831 = vunpack.c.l.b16 %v292
    %v832 = vunpack.c.h.b16 %v292
    %v833 = vunpack.c.l.b16 %v293
    %v834 = vunpack.c.h.b16 %v293
    %v835 = vunpack.c.l.b16 %v294
    %v836 = vunpack.c.h.b16 %v294
    %v837 = vunpack.c.l.b16 %v295
    %v838 = vunpack.c.h.b16 %v295
    %v839 = vunpack.c.l.b16 %v296
    %v840 = vunpack.c.h.b16 %v296
    %v841 = vunpack.c.l.b16 %v297
    %v842 = vunpack.c.h.b16 %v297
    %v843 = vunpack.c.l.b16 %v298
    %v844 = vunpack.c.h.b16 %v298
    %v845 = vunpack.c.l.b16 %v299
    %v846 = vunpack.c.h.b16 %v299
    %v847 = vunpack.c.l.b16 %v300
    %v848 = vunpack.c.h.b16 %v300
    %v849 = vunpack.c.l.b16 %v301
    %v850 = vunpack.c.h.b16 %v301
    %v851 = vunpack.c.l.b16 %v302
    %v852 = vunpack.c.h.b16 %v302
    %v853 = vunpack.c.l.b16 %v303
    %v854 = vunpack.c.h.b16 %v303
    %v855 = vunpack.c.l.b16 %v304
    %v856 = vunpack.c.h.b16 %v304
    %v857 = vunpack.c.l.b16 %v305
    %v858 = vunpack.c.h.b16 %v305
    %v859 = vunpack.c.l.b16 %v306
    %v860 = vunpack.c.h.b16 %v306
    %v861 = vunpack.c.l.b16 %v307
    %v862 = vunpack.c.h.b16 %v307
    %v863 = vunpack.c.l.b16 %v308
    %v864 = vunpack.c.h.b16 %v308
    %v865 = vpack.c.b16 %v613, %v609
    %v866 = vpack.c.b16 %v614, %v610
    %v867 = vpack.c.b16 %v615, %v611
    %v868 = vpack.c.b16 %v616, %v612
    %v869 = vpack.c.b16 %v621, %v617
    %v870 = vpack.c.b16 %v622, %v618
    %v871 = vpack.c.b16 %v623, %v619
    %v872 = vpack.c.b16 %v624, %v620
    %v873 = vpack.c.b16 %v629, %v625
    %v874 = vpack.c.b16 %v630, %v626
    %v875 = vpack.c.b16 %v631, %v627
    %v876 = vpack.c.b16 %v632, %v628
    %v877 = vpack.c.b16 %v637, %v633
    %v878 = vpack.c.b16 %v638, %v634
    %v879 = vpack.c.b16 %v639, %v635
    %v880 = vpack.c.b16 %v640, %v636
    %v881 = vpack.c.b16 %v645, %v641
    %v882 = vpack.c.b16 %v646, %v642
    %v883 = vpack.c.b16 %v647, %v643
    %v884 = vpack.c.b16 %v648, %v644
    %v885 = vpack.c.b16 %v653, %v649
    %v886 = vpack.c.b16 %v654, %v650
    %v887 = vpack.c.b16 %v655, %v651
    %v888 = vpack.c.b16 %v656, %v652
    %v889 = vpack.c.b16 %v661, %v657
    %v890 = vpack.c.b16 %v662, %v658
    %v891 = vpack.c.b16 %v663, %v659
    %v892 = vpack.c.b16 %v664, %v660
    %v893 = vpack.c.b16 %v669, %v665
    %v894 = vpack.c.b16 %v670, %v666
    %v895 = vpack.c.b16 %v671, %v667
    %v896 = vpack.c.b16 %v672, %v668
    %v897 = vpack.c.b16 %v677, %v673
    %v898 = vpack.c.b16 %v678, %v674
    %v899 = vpack.c.b16 %v679, %v675
    %v900 = vpack.c.b16 %v680, %v676
    %v901 = vpack.c.b16 %v685, %v681
    %v902 = vpack.c.b16 %v686, %v682
    %v903 = vpack.c.b16 %v687, %v683
    %v904 = vpack.c.b16 %v688, %v684
    %v905 = vpack.c.b16 %v693, %v689
    %v906 = vpack.c.b16 %v694, %v690
    %v907 = vpack.c.b16 %v695, %v691
    %v908 = vpack.c.b16 %v696, %v692
    %v909 = vpack.c.b16 %v701, %v697
    %v910 = vpack.c.b16 %v702, %v698
    %v911 = vpack.c.b16 %v703, %v699
    %v912 = vpack.c.b16 %v704, %v700
    %v913 = vpack.c.b16 %v709, %v705
    %v914 = vpack.c.b16 %v710, %v706
    %v915 = vpack.c.b16 %v711, %v707
    %v916 = vpack.c.b16 %v712, %v708
    %v917 = vpack.c.b16 %v717, %v713
    %v918 = vpack.c.b16 %v718, %v714
    %v919 = vpack.c.b16 %v719, %v715
    %v920 = vpack.c.b16 %v720, %v716
    %v921 = vpack.c.b16 %v725, %v721
    %v922 = vpack.c.b16 %v726, %v722
    %v923 = vpack.c.b16 %v727, %v723
    %v924 = vpack.c.b16 %v728, %v724
    %v925 = vpack.c.b16 %v733, %v729
    %v926 = vpack.c.b16 %v734, %v730
    %v927 = vpack.c.b16 %v735, %v731
    %v928 = vpack.c.b16 %v736, %v732
    %v929 = vpack.c.b16 %v741, %v737
    %v930 = vpack.c.b16 %v742, %v738
    %v931 = vpack.c.b16 %v743, %v739
    %v932 = vpack.c.b16 %v744, %v740
    %v933 = vpack.c.b16 %v749, %v745
    %v934 = vpack.c.b16 %v750, %v746
    %v935 = vpack.c.b16 %v751, %v747
    %v936 = vpack.c.b16 %v752, %v748
    %v937 = vpack.c.b16 %v757, %v753
    %v938 = vpack.c.b16 %v758, %v754
    %v939 = vpack.c.b16 %v759, %v755
    %v940 = vpack.c.b16 %v760, %v756
    %v941 = vpack.c.b16 %v765, %v761
    %v942 = vpack.c.b16 %v766, %v762
    %v943 = vpack.c.b16 %v767, %v763
    %v944 = vpack.c.b16 %v768, %v764
    %v945 = vpack.c.b16 %v773, %v769
    %v946 = vpack.c.b16 %v774, %v770
    %v947 = vpack.c.b16 %v775, %v771
    %v948 = vpack.c.b16 %v776, %v772
    %v949 = vpack.c.b16 %v781, %v777
    %v950 = vpack.c.b16 %v782, %v778
    %v951 = vpack.c.b16 %v783, %v779
    %v952 = vpack.c.b16 %v784, %v780
    %v953 = vpack.c.b16 %v789, %v785
    %v954 = vpack.c.b16 %v790, %v786
    %v955 = vpack.c.b16 %v791, %v787
    %v956 = vpack.c.b16 %v792, %v788
    %v957 = vpack.c.b16 %v797, %v793
    %v958 = vpack.c.b16 %v798, %v794
    %v959 = vpack.c.b16 %v799, %v795
    %v960 = vpack.c.b16 %v800, %v796
    %v961 = vpack.c.b16 %v805, %v801
    %v962 = vpack.c.b16 %v806, %v802
    %v963 = vpack.c.b16 %v807, %v803
    %v964 = vpack.c.b16 %v808, %v804
    %v965 = vpack.c.b16 %v813, %v809
    %v966 = vpack.c.b16 %v814, %v810
    %v967 = vpack.c.b16 %v815, %v811
    %v968 = vpack.c.b16 %v816, %v812
    %v969 = vpack.c.b16 %v821, %v817
    %v970 = vpack.c.b16 %v822, %v818
    %v971 = vpack.c.b16 %v823, %v819
    %v972 = vpack.c.b16 %v824, %v820
    %v973 = vpack.c.b16 %v829, %v825
    %v974 = vpack.c.b16 %v830, %v826
    %v975 = vpack.c.b16 %v831, %v827
    %v976 = vpack.c.b16 %v832, %v828
    %v977 = vpack.c.b16 %v837, %v833
    %v978 = vpack.c.b16 %v838, %v834
    %v979 = vpack.c.b16 %v839, %v835
    %v980 = vpack.c.b16 %v840, %v836
    %v981 = vpack.c.b16 %v845, %v841
    %v982 = vpack.c.b16 %v846, %v842
    %v983 = vpack.c.b16 %v847, %v843
    %v984 = vpack.c.b16 %v848, %v844
    %v985 = vpack.c.b16 %v853, %v849
    %v986 = vpack.c.b16 %v854, %v850
    %v987 = vpack.c.b16 %v855, %v851
    %v988 = vpack.c.b16 %v856, %v852
    %v989 = vpack.c.b16 %v861, %v857
    %v990 = vpack.c.b16 %v862, %v858
    %v991 = vpack.c.b16 %v863, %v859
    %v992 = vpack.c.b16 %v864, %v860
    %1121 = vmatpush.bf16.msra.mxu0 %v893
    %1122 = vmatpush.bf16.msra.mxu0 %v889
    %1123 = vmatpush.bf16.msra.mxu0 %v885
    %1124 = vmatpush.bf16.msra.mxu0 %v881
    %1125 = vmatpush.bf16.msra.mxu0 %v877
    %1126 = vmatpush.bf16.msra.mxu0 %v873
    %1127 = vmatpush.bf16.msra.mxu0 %v869
    %1128 = vmatpush.bf16.msra.mxu0 %v865
    %1129 = vmatmul.bf16.gmra.mxu0 %v468
    %v1130 = vpop.f32.mrf.mxu0
    %v1131 = vadd.f32 %v473, %v1130
    %v1132 = vpop.f32.mrf.mxu0
    %1133 = vdwg.mxu0
    %1134 = vmatpush.bf16.msra.mxu0 %v925
    %1135 = vmatpush.bf16.msra.mxu0 %v921
    %1136 = vmatpush.bf16.msra.mxu0 %v917
    %1137 = vmatpush.bf16.msra.mxu0 %v913
    %1138 = vmatpush.bf16.msra.mxu0 %v909
    %1139 = vmatpush.bf16.msra.mxu0 %v905
    %1140 = vmatpush.bf16.msra.mxu0 %v901
    %1141 = vmatpush.bf16.msra.mxu0 %v897
    %1142 = vmatmul.bf16.gmra.mxu0 %v469
    %v1143 = vpop.f32.mrf.mxu0
    %v1144 = vadd.f32 %v1131, %v1143
    %v1145 = vpop.f32.mrf.mxu0
    %1146 = vdwg.mxu0
    %1147 = vmatpush.bf16.msra.mxu0 %v957
    %1148 = vmatpush.bf16.msra.mxu0 %v953
    %1149 = vmatpush.bf16.msra.mxu0 %v949
    %1150 = vmatpush.bf16.msra.mxu0 %v945
    %1151 = vmatpush.bf16.msra.mxu0 %v941
    %1152 = vmatpush.bf16.msra.mxu0 %v937
    %1153 = vmatpush.bf16.msra.mxu0 %v933
    %1154 = vmatpush.bf16.msra.mxu0 %v929
    %1155 = vmatmul.bf16.gmra.mxu0 %v470
    %v1156 = vpop.f32.mrf.mxu0
    %v1157 = vadd.f32 %v1144, %v1156
    %v1158 = vpop.f32.mrf.mxu0
    %1159 = vdwg.mxu0
    %1160 = vmatpush.bf16.msra.mxu0 %v989
    %1161 = vmatpush.bf16.msra.mxu0 %v985
    %1162 = vmatpush.bf16.msra.mxu0 %v981
    %1163 = vmatpush.bf16.msra.mxu0 %v977
    %1164 = vmatpush.bf16.msra.mxu0 %v973
    %1165 = vmatpush.bf16.msra.mxu0 %v969
    %1166 = vmatpush.bf16.msra.mxu0 %v965
    %1167 = vmatpush.bf16.msra.mxu0 %v961
    %1168 = vmatmul.bf16.gmra.mxu0 %v471
    %v1169 = vpop.f32.mrf.mxu0
    %v1170 = vadd.f32 %v1157, %v1169
    %v1171 = vpop.f32.mrf.mxu0
    %1172 = vdwg.mxu0
    %1173 = vmatpush.bf16.msra.mxu0 %v894
    %1174 = vmatpush.bf16.msra.mxu0 %v890
    %1175 = vmatpush.bf16.msra.mxu0 %v886
    %1176 = vmatpush.bf16.msra.mxu0 %v882
    %1177 = vmatpush.bf16.msra.mxu0 %v878
    %1178 = vmatpush.bf16.msra.mxu0 %v874
    %1179 = vmatpush.bf16.msra.mxu0 %v870
    %1180 = vmatpush.bf16.msra.mxu0 %v866
    %1181 = vmatmul.bf16.gmra.mxu0 %v468
    %v1182 = vpop.f32.mrf.mxu0
    %v1183 = vadd.f32 %v474, %v1182
    %v1184 = vpop.f32.mrf.mxu0
    %1185 = vdwg.mxu0
    %1186 = vmatpush.bf16.msra.mxu0 %v926
    %1187 = vmatpush.bf16.msra.mxu0 %v922
    %1188 = vmatpush.bf16.msra.mxu0 %v918
    %1189 = vmatpush.bf16.msra.mxu0 %v914
    %1190 = vmatpush.bf16.msra.mxu0 %v910
    %1191 = vmatpush.bf16.msra.mxu0 %v906
    %1192 = vmatpush.bf16.msra.mxu0 %v902
    %1193 = vmatpush.bf16.msra.mxu0 %v898
    %1194 = vmatmul.bf16.gmra.mxu0 %v469
    %v1195 = vpop.f32.mrf.mxu0
    %v1196 = vadd.f32 %v1183, %v1195
    %v1197 = vpop.f32.mrf.mxu0
    %1198 = vdwg.mxu0
    %1199 = vmatpush.bf16.msra.mxu0 %v958
    %1200 = vmatpush.bf16.msra.mxu0 %v954
    %1201 = vmatpush.bf16.msra.mxu0 %v950
    %1202 = vmatpush.bf16.msra.mxu0 %v946
    %1203 = vmatpush.bf16.msra.mxu0 %v942
    %1204 = vmatpush.bf16.msra.mxu0 %v938
    %1205 = vmatpush.bf16.msra.mxu0 %v934
    %1206 = vmatpush.bf16.msra.mxu0 %v930
    %1207 = vmatmul.bf16.gmra.mxu0 %v470
    %v1208 = vpop.f32.mrf.mxu0
    %v1209 = vadd.f32 %v1196, %v1208
    %v1210 = vpop.f32.mrf.mxu0
    %1211 = vdwg.mxu0
    %1212 = vmatpush.bf16.msra.mxu0 %v990
    %1213 = vmatpush.bf16.msra.mxu0 %v986
    %1214 = vmatpush.bf16.msra.mxu0 %v982
    %1215 = vmatpush.bf16.msra.mxu0 %v978
    %1216 = vmatpush.bf16.msra.mxu0 %v974
    %1217 = vmatpush.bf16.msra.mxu0 %v970
    %1218 = vmatpush.bf16.msra.mxu0 %v966
    %1219 = vmatpush.bf16.msra.mxu0 %v962
    %1220 = vmatmul.bf16.gmra.mxu0 %v471
    %v1221 = vpop.f32.mrf.mxu0
    %v1222 = vadd.f32 %v1209, %v1221
    %v1223 = vpop.f32.mrf.mxu0
    %1224 = vdwg.mxu0
    %1225 = vmatpush.bf16.msra.mxu0 %v895
    %1226 = vmatpush.bf16.msra.mxu0 %v891
    %1227 = vmatpush.bf16.msra.mxu0 %v887
    %1228 = vmatpush.bf16.msra.mxu0 %v883
    %1229 = vmatpush.bf16.msra.mxu0 %v879
    %1230 = vmatpush.bf16.msra.mxu0 %v875
    %1231 = vmatpush.bf16.msra.mxu0 %v871
    %1232 = vmatpush.bf16.msra.mxu0 %v867
    %1233 = vmatmul.bf16.gmra.mxu0 %v468
    %v1234 = vpop.f32.mrf.mxu0
    %v1235 = vadd.f32 %v475, %v1234
    %v1236 = vpop.f32.mrf.mxu0
    %1237 = vdwg.mxu0
    %1238 = vmatpush.bf16.msra.mxu0 %v927
    %1239 = vmatpush.bf16.msra.mxu0 %v923
    %1240 = vmatpush.bf16.msra.mxu0 %v919
    %1241 = vmatpush.bf16.msra.mxu0 %v915
    %1242 = vmatpush.bf16.msra.mxu0 %v911
    %1243 = vmatpush.bf16.msra.mxu0 %v907
    %1244 = vmatpush.bf16.msra.mxu0 %v903
    %1245 = vmatpush.bf16.msra.mxu0 %v899
    %1246 = vmatmul.bf16.gmra.mxu0 %v469
    %v1247 = vpop.f32.mrf.mxu0
    %v1248 = vadd.f32 %v1235, %v1247
    %v1249 = vpop.f32.mrf.mxu0
    %1250 = vdwg.mxu0
    %1251 = vmatpush.bf16.msra.mxu0 %v959
    %1252 = vmatpush.bf16.msra.mxu0 %v955
    %1253 = vmatpush.bf16.msra.mxu0 %v951
    %1254 = vmatpush.bf16.msra.mxu0 %v947
    %1255 = vmatpush.bf16.msra.mxu0 %v943
    %1256 = vmatpush.bf16.msra.mxu0 %v939
    %1257 = vmatpush.bf16.msra.mxu0 %v935
    %1258 = vmatpush.bf16.msra.mxu0 %v931
    %1259 = vmatmul.bf16.gmra.mxu0 %v470
    %v1260 = vpop.f32.mrf.mxu0
    %v1261 = vadd.f32 %v1248, %v1260
    %v1262 = vpop.f32.mrf.mxu0
    %1263 = vdwg.mxu0
    %1264 = vmatpush.bf16.msra.mxu0 %v991
    %1265 = vmatpush.bf16.msra.mxu0 %v987
    %1266 = vmatpush.bf16.msra.mxu0 %v983
    %1267 = vmatpush.bf16.msra.mxu0 %v979
    %1268 = vmatpush.bf16.msra.mxu0 %v975
    %1269 = vmatpush.bf16.msra.mxu0 %v971
    %1270 = vmatpush.bf16.msra.mxu0 %v967
    %1271 = vmatpush.bf16.msra.mxu0 %v963
    %1272 = vmatmul.bf16.gmra.mxu0 %v471
    %v1273 = vpop.f32.mrf.mxu0
    %v1274 = vadd.f32 %v1261, %v1273
    %v1275 = vpop.f32.mrf.mxu0
    %1276 = vdwg.mxu0
    %1277 = vmatpush.bf16.msra.mxu0 %v896
    %1278 = vmatpush.bf16.msra.mxu0 %v892
    %1279 = vmatpush.bf16.msra.mxu0 %v888
    %1280 = vmatpush.bf16.msra.mxu0 %v884
    %1281 = vmatpush.bf16.msra.mxu0 %v880
    %1282 = vmatpush.bf16.msra.mxu0 %v876
    %1283 = vmatpush.bf16.msra.mxu0 %v872
    %1284 = vmatpush.bf16.msra.mxu0 %v868
    %1285 = vmatmul.bf16.gmra.mxu0 %v468
    %v1286 = vpop.f32.mrf.mxu0
    %v1287 = vadd.f32 %v476, %v1286
    %v1288 = vpop.f32.mrf.mxu0
    %1289 = vdwg.mxu0
    %1290 = vmatpush.bf16.msra.mxu0 %v928
    %1291 = vmatpush.bf16.msra.mxu0 %v924
    %1292 = vmatpush.bf16.msra.mxu0 %v920
    %1293 = vmatpush.bf16.msra.mxu0 %v916
    %1294 = vmatpush.bf16.msra.mxu0 %v912
    %1295 = vmatpush.bf16.msra.mxu0 %v908
    %1296 = vmatpush.bf16.msra.mxu0 %v904
    %1297 = vmatpush.bf16.msra.mxu0 %v900
    %1298 = vmatmul.bf16.gmra.mxu0 %v469
    %v1299 = vpop.f32.mrf.mxu0
    %v1300 = vadd.f32 %v1287, %v1299
    %v1301 = vpop.f32.mrf.mxu0
    %1302 = vdwg.mxu0
    %1303 = vmatpush.bf16.msra.mxu0 %v960
    %1304 = vmatpush.bf16.msra.mxu0 %v956
    %1305 = vmatpush.bf16.msra.mxu0 %v952
    %1306 = vmatpush.bf16.msra.mxu0 %v948
    %1307 = vmatpush.bf16.msra.mxu0 %v944
    %1308 = vmatpush.bf16.msra.mxu0 %v940
    %1309 = vmatpush.bf16.msra.mxu0 %v936
    %1310 = vmatpush.bf16.msra.mxu0 %v932
    %1311 = vmatmul.bf16.gmra.mxu0 %v470
    %v1312 = vpop.f32.mrf.mxu0
    %v1313 = vadd.f32 %v1300, %v1312
    %v1314 = vpop.f32.mrf.mxu0
    %1315 = vdwg.mxu0
    %1316 = vmatpush.bf16.msra.mxu0 %v992
    %1317 = vmatpush.bf16.msra.mxu0 %v988
    %1318 = vmatpush.bf16.msra.mxu0 %v984
    %1319 = vmatpush.bf16.msra.mxu0 %v980
    %1320 = vmatpush.bf16.msra.mxu0 %v976
    %1321 = vmatpush.bf16.msra.mxu0 %v972
    %1322 = vmatpush.bf16.msra.mxu0 %v968
    %1323 = vmatpush.bf16.msra.mxu0 %v964
    %1324 = vmatmul.bf16.gmra.mxu0 %v471
    %v1325 = vpop.f32.mrf.mxu0
    %v1326 = vadd.f32 %v1313, %v1325
    %v1327 = vpop.f32.mrf.mxu0
    %1328 = vdwg.mxu0
    %v1329 = vmax.f32 %v1170, 0.0
    %v1330 = vmax.f32 %v1222, 0.0
    %v1331 = vmax.f32 %v1274, 0.0
    %v1332 = vmax.f32 %v1326, 0.0
    %v1333 = vpack.c.bf16 %v1329, %v1329
    %v1334 = vpack.c.bf16 %v1330, %v1330
    %v1335 = vpack.c.bf16 %v1331, %v1331
    %v1336 = vpack.c.bf16 %v1332, %v1332
    %v1338 = vperm.slane %v374, 0
    %v1404 = vunpack.c.l.b16 %v310
    %v1405 = vunpack.c.l.b16 %v311
    %v1406 = vunpack.c.l.b16 %v312
    %v1407 = vunpack.c.l.b16 %v313
    %v1408 = vunpack.c.l.b16 %v314
    %v1409 = vunpack.c.l.b16 %v315
    %v1410 = vunpack.c.l.b16 %v316
    %v1411 = vunpack.c.l.b16 %v317
    %v1412 = vunpack.c.l.b16 %v318
    %v1413 = vunpack.c.l.b16 %v319
    %v1414 = vunpack.c.l.b16 %v320
    %v1415 = vunpack.c.l.b16 %v321
    %v1416 = vunpack.c.l.b16 %v322
    %v1417 = vunpack.c.l.b16 %v323
    %v1418 = vunpack.c.l.b16 %v324
    %v1419 = vunpack.c.l.b16 %v325
    %v1420 = vunpack.c.l.b16 %v326
    %v1421 = vunpack.c.l.b16 %v327
    %v1422 = vunpack.c.l.b16 %v328
    %v1423 = vunpack.c.l.b16 %v329
    %v1424 = vunpack.c.l.b16 %v330
    %v1425 = vunpack.c.l.b16 %v331
    %v1426 = vunpack.c.l.b16 %v332
    %v1427 = vunpack.c.l.b16 %v333
    %v1428 = vunpack.c.l.b16 %v334
    %v1429 = vunpack.c.l.b16 %v335
    %v1430 = vunpack.c.l.b16 %v336
    %v1431 = vunpack.c.l.b16 %v337
    %v1432 = vunpack.c.l.b16 %v338
    %v1433 = vunpack.c.l.b16 %v339
    %v1434 = vunpack.c.l.b16 %v340
    %v1435 = vunpack.c.l.b16 %v341
    %v1436 = vunpack.c.l.b16 %v342
    %v1437 = vunpack.c.l.b16 %v343
    %v1438 = vunpack.c.l.b16 %v344
    %v1439 = vunpack.c.l.b16 %v345
    %v1440 = vunpack.c.l.b16 %v346
    %v1441 = vunpack.c.l.b16 %v347
    %v1442 = vunpack.c.l.b16 %v348
    %v1443 = vunpack.c.l.b16 %v349
    %v1444 = vunpack.c.l.b16 %v350
    %v1445 = vunpack.c.l.b16 %v351
    %v1446 = vunpack.c.l.b16 %v352
    %v1447 = vunpack.c.l.b16 %v353
    %v1448 = vunpack.c.l.b16 %v354
    %v1449 = vunpack.c.l.b16 %v355
    %v1450 = vunpack.c.l.b16 %v356
    %v1451 = vunpack.c.l.b16 %v357
    %v1452 = vunpack.c.l.b16 %v358
    %v1453 = vunpack.c.l.b16 %v359
    %v1454 = vunpack.c.l.b16 %v360
    %v1455 = vunpack.c.l.b16 %v361
    %v1456 = vunpack.c.l.b16 %v362
    %v1457 = vunpack.c.l.b16 %v363
    %v1458 = vunpack.c.l.b16 %v364
    %v1459 = vunpack.c.l.b16 %v365
    %v1460 = vunpack.c.l.b16 %v366
    %v1461 = vunpack.c.l.b16 %v367
    %v1462 = vunpack.c.l.b16 %v368
    %v1463 = vunpack.c.l.b16 %v369
    %v1464 = vunpack.c.l.b16 %v370
    %v1465 = vunpack.c.l.b16 %v371
    %v1466 = vunpack.c.l.b16 %v372
    %v1467 = vunpack.c.l.b16 %v373
    %v1468 = vpack.c.b16 %v1405, %v1404
    %v1469 = vpack.c.b16 %v1407, %v1406
    %v1470 = vpack.c.b16 %v1409, %v1408
    %v1471 = vpack.c.b16 %v1411, %v1410
    %v1472 = vpack.c.b16 %v1413, %v1412
    %v1473 = vpack.c.b16 %v1415, %v1414
    %v1474 = vpack.c.b16 %v1417, %v1416
    %v1475 = vpack.c.b16 %v1419, %v1418
    %v1476 = vpack.c.b16 %v1421, %v1420
    %v1477 = vpack.c.b16 %v1423, %v1422
    %v1478 = vpack.c.b16 %v1425, %v1424
    %v1479 = vpack.c.b16 %v1427, %v1426
    %v1480 = vpack.c.b16 %v1429, %v1428
    %v1481 = vpack.c.b16 %v1431, %v1430
    %v1482 = vpack.c.b16 %v1433, %v1432
    %v1483 = vpack.c.b16 %v1435, %v1434
    %v1484 = vpack.c.b16 %v1437, %v1436
    %v1485 = vpack.c.b16 %v1439, %v1438
    %v1486 = vpack.c.b16 %v1441, %v1440
    %v1487 = vpack.c.b16 %v1443, %v1442
    %v1488 = vpack.c.b16 %v1445, %v1444
    %v1489 = vpack.c.b16 %v1447, %v1446
    %v1490 = vpack.c.b16 %v1449, %v1448
    %v1491 = vpack.c.b16 %v1451, %v1450
    %v1492 = vpack.c.b16 %v1453, %v1452
    %v1493 = vpack.c.b16 %v1455, %v1454
    %v1494 = vpack.c.b16 %v1457, %v1456
    %v1495 = vpack.c.b16 %v1459, %v1458
    %v1496 = vpack.c.b16 %v1461, %v1460
    %v1497 = vpack.c.b16 %v1463, %v1462
    %v1498 = vpack.c.b16 %v1465, %v1464
    %v1499 = vpack.c.b16 %v1467, %v1466
    %1532 = vmatpush.bf16.msra.mxu0 %v1475
    %1533 = vmatpush.bf16.msra.mxu0 %v1474
    %1534 = vmatpush.bf16.msra.mxu0 %v1473
    %1535 = vmatpush.bf16.msra.mxu0 %v1472
    %1536 = vmatpush.bf16.msra.mxu0 %v1471
    %1537 = vmatpush.bf16.msra.mxu0 %v1470
    %1538 = vmatpush.bf16.msra.mxu0 %v1469
    %1539 = vmatpush.bf16.msra.mxu0 %v1468
    %1540 = vmatmul.bf16.gmra.mxu0 %v1333
    %v1541 = vpop.f32.mrf.mxu0
    %v1542 = vadd.f32 %v1338, %v1541
    %v1543 = vpop.f32.mrf.mxu0
    %1544 = vdwg.mxu0
    %1545 = vmatpush.bf16.msra.mxu0 %v1483
    %1546 = vmatpush.bf16.msra.mxu0 %v1482
    %1547 = vmatpush.bf16.msra.mxu0 %v1481
    %1548 = vmatpush.bf16.msra.mxu0 %v1480
    %1549 = vmatpush.bf16.msra.mxu0 %v1479
    %1550 = vmatpush.bf16.msra.mxu0 %v1478
    %1551 = vmatpush.bf16.msra.mxu0 %v1477
    %1552 = vmatpush.bf16.msra.mxu0 %v1476
    %1553 = vmatmul.bf16.gmra.mxu0 %v1334
    %v1554 = vpop.f32.mrf.mxu0
    %v1555 = vadd.f32 %v1542, %v1554
    %v1556 = vpop.f32.mrf.mxu0
    %1557 = vdwg.mxu0
    %1558 = vmatpush.bf16.msra.mxu0 %v1491
    %1559 = vmatpush.bf16.msra.mxu0 %v1490
    %1560 = vmatpush.bf16.msra.mxu0 %v1489
    %1561 = vmatpush.bf16.msra.mxu0 %v1488
    %1562 = vmatpush.bf16.msra.mxu0 %v1487
    %1563 = vmatpush.bf16.msra.mxu0 %v1486
    %1564 = vmatpush.bf16.msra.mxu0 %v1485
    %1565 = vmatpush.bf16.msra.mxu0 %v1484
    %1566 = vmatmul.bf16.gmra.mxu0 %v1335
    %v1567 = vpop.f32.mrf.mxu0
    %v1568 = vadd.f32 %v1555, %v1567
    %v1569 = vpop.f32.mrf.mxu0
    %1570 = vdwg.mxu0
    %1571 = vmatpush.bf16.msra.mxu0 %v1499
    %1572 = vmatpush.bf16.msra.mxu0 %v1498
    %1573 = vmatpush.bf16.msra.mxu0 %v1497
    %1574 = vmatpush.bf16.msra.mxu0 %v1496
    %1575 = vmatpush.bf16.msra.mxu0 %v1495
    %1576 = vmatpush.bf16.msra.mxu0 %v1494
    %1577 = vmatpush.bf16.msra.mxu0 %v1493
    %1578 = vmatpush.bf16.msra.mxu0 %v1492
    %1579 = vmatmul.bf16.gmra.mxu0 %v1336
    %v1580 = vpop.f32.mrf.mxu0
    %v1581 = vadd.f32 %v1568, %v1580
    %v1582 = vpop.f32.mrf.mxu0
    %1583 = vdwg.mxu0
    %1584 = vst [vmem:[#allocation13] sm:$0xff] %v1581
    // Predicated region
    $region54: #{tpu_custom_call.1} parent=1 // pred_check
      _
    $region55: #{tpu_custom_call.1} parent=1 // pred_check_branch
      %1586 = sbr.rel (0) target = $region57
    $region56: #{tpu_custom_call.1} parent=1 // pred_region
      %1588 = vsyncadd [#allocation4], 0
      %s1590 = sshll.u32 [#allocation13], 4
      %s1591 = int_to_ptr.vmem [resolvable:$true] %s1590
      %s1592 = sshll.u32 %s7, 4
      %s1593 = int_to_ptr.hbm [resolvable:$true] %s1592
      %1595 = dma.vmem_to_hbm [thread:$0]  %s1591, 128, %s1593, [#allocation4]
    $region57: #{tpu_custom_call.1} parent=1 // pred_fallthru
      _
    // Predicated region
    $region58: #{tpu_custom_call.1} parent=1 // pred_check
      _
    $region59: #{tpu_custom_call.1} parent=1 // pred_check_branch
      %1597 = sbr.rel (0) target = $region61
    $region60: #{tpu_custom_call.1} parent=1 // pred_region
      %1599 = dma.done [#allocation4], 128
    $region61: #{tpu_custom_call.1} parent=1 // pred_fallthru
      _
    %1600 = vsyncpa [#allocation3], 1
    %1601 = vsyncpa [#allocation6], 1
    %1602 = vsyncpa [#allocation9], 1
    %1603 = vsyncpa [#allocation12], 1
    %1604 = vsyncpa [#allocation4], 1

</llo_original>
